<compile_context>
chip_gen: v5e
topology: v5e:2x2
jax: 0.10.0
libtpu: 0.0.40
codegen_flags: <defaults>
</compile_context>

<pallas_src>
import jax
import jax.numpy as jnp
from jax.experimental import pallas as pl
from jax.experimental.pallas import tpu as pltpu


def _pick_tile_n(n, c, itemsize):
    """Largest multiple-of-8 row tile whose double-buffered logits block stays small."""
    budget_per_buf = 4 * 1024 * 1024  # ~4 MiB per x buffer -> ~8 MiB double-buffered
    t = budget_per_buf // max(1, c * itemsize)
    t = max(8, min(1024, (t // 8) * 8))
    n_pad8 = max(8, ((n + 7) // 8) * 8)
    return min(t, n_pad8)


def _make_cdt_kernel(n_rows, tile_n, has_weight, need_mask):
    """Build the per-tile kernel, specialized at trace time on weight/mask handling."""

    def _row_mask():
        row0 = pl.program_id(0) * tile_n
        rows = row0 + jax.lax.broadcasted_iota(jnp.int32, (tile_n, 1), 0)
        return (rows < n_rows).astype(jnp.float32)

    def _core(x_ref, delta_ref, tgt_ref):
        x = x_ref[...].astype(jnp.float32)            # [TILE_N, C] (upcast on VPU)
        delta = delta_ref[...].astype(jnp.float32)    # [1, C]
        z = x * delta                                 # scaled logits

        # numerically-stable log-sum-exp over classes
        m = jnp.max(z, axis=-1, keepdims=True)                                 # [TILE_N, 1]
        lse = m + jnp.log(jnp.sum(jnp.exp(z - m), axis=-1, keepdims=True))     # [TILE_N, 1]

        # one-hot gather of the target logit
        tgt = tgt_ref[...]                                                     # [TILE_N, 1]
        iota_c = jax.lax.broadcasted_iota(jnp.int32, z.shape, 1)               # [TILE_N, C]
        onehot = (iota_c == tgt).astype(jnp.float32)                           # [TILE_N, C]
        z_t = jnp.sum(z * onehot, axis=-1, keepdims=True)                      # [TILE_N, 1]
        return lse - z_t, onehot

    if has_weight:
        def kernel(x_ref, delta_ref, tgt_ref, w_ref, loss_ref, wrow_ref):
            per_row, onehot = _core(x_ref, delta_ref, tgt_ref)
            w = w_ref[...].astype(jnp.float32)                                 # [1, C]
            w_t = jnp.sum(w * onehot, axis=-1, keepdims=True)                  # [TILE_N, 1]
            per_row = per_row * w_t
            if need_mask:
                mask = _row_mask()
                per_row = per_row * mask
                w_t = w_t * mask
            loss_ref[...] = per_row
            wrow_ref[...] = w_t
    else:
        def kernel(x_ref, delta_ref, tgt_ref, loss_ref):
            per_row, _ = _core(x_ref, delta_ref, tgt_ref)
            if need_mask:
                per_row = per_row * _row_mask()
            loss_ref[...] = per_row

    return kernel


def cdt_loss(x, target, delta_list, gamma=0.5, weight=None, reduction=None):
    """x: [N, C] float logits (any float dtype), target: [N] ints, delta_list: [C]."""
    n, c = x.shape

    # parameter preprocessing (matches the torch module __init__)
    delta = jnp.power(jnp.asarray(delta_list, jnp.float32), gamma)
    delta = (delta.shape[0] * delta / jnp.sum(delta)).reshape(1, c)

    tgt = jnp.asarray(target, jnp.int32).reshape(n, 1)

    itemsize = jnp.dtype(x.dtype).itemsize
    tile_n = _pick_tile_n(n, c, itemsize)
    n_pad = (-n) % tile_n
    n_padded = n + n_pad
    num_tiles = n_padded // tile_n

    if n_pad:
        # padded rows use class 0 as a dummy target; they are masked in-kernel
        x = jnp.pad(x, ((0, n_pad), (0, 0)))
        tgt = jnp.pad(tgt, ((0, n_pad), (0, 0)))

    has_weight = weight is not None

    in_specs = [
        pl.BlockSpec((tile_n, c), lambda i: (i, 0)),   # logits tile (native dtype)
        pl.BlockSpec((1, c), lambda i: (0, 0)),        # delta, broadcast to every tile
        pl.BlockSpec((tile_n, 1), lambda i: (i, 0)),   # targets
    ]
    inputs = [x, delta, tgt]

    row_spec = pl.BlockSpec((tile_n, 1), lambda i: (i, 0))
    bytes_accessed = n_padded * c * itemsize + c * 4 + n_padded * 4 + n_padded * 4

    if has_weight:
        w = jnp.asarray(weight, jnp.float32).reshape(1, c)
        in_specs.append(pl.BlockSpec((1, c), lambda i: (0, 0)))
        inputs.append(w)
        out_shape = (jax.ShapeDtypeStruct((n_padded, 1), jnp.float32),
                     jax.ShapeDtypeStruct((n_padded, 1), jnp.float32))
        out_specs = (row_spec, row_spec)
        bytes_accessed += c * 4 + n_padded * 4
    else:
        out_shape = jax.ShapeDtypeStruct((n_padded, 1), jnp.float32)
        out_specs = row_spec

    kernel = _make_cdt_kernel(n, tile_n, has_weight, n_pad > 0)

    outs = pl.pallas_call(
        kernel,
        grid=(num_tiles,),
        in_specs=in_specs,
        out_specs=out_specs,
        out_shape=out_shape,
        compiler_params=pltpu.CompilerParams(
            dimension_semantics=("parallel",)),
        cost_estimate=pl.CostEstimate(
            flops=6 * n_padded * c,
            transcendentals=n_padded * c,
            bytes_accessed=bytes_accessed),
    )(*inputs)

    if has_weight:
        loss_rows, w_rows = outs
        loss_sum = jnp.sum(loss_rows)
        w_sum = jnp.sum(w_rows)
    else:
        loss_sum = jnp.sum(outs)
        w_sum = jnp.float32(n)

    if reduction == "sum":
        return loss_sum
    # default F.cross_entropy reduction: (weighted) mean
    return loss_sum / w_sum


if __name__ == "__main__":
    key = jax.random.PRNGKey(0)
    N, C = 8, 32  # small shapes: batch=8, classes=32

    kx, kt, kw = jax.random.split(key, 3)
    x = jax.random.normal(kx, (N, C), jnp.float32)
    target = jax.random.randint(kt, (N,), 0, C, jnp.int32)

    # deterministic class-count list for Delta_list (imbalanced class counts)
    delta_list = jnp.arange(1, C + 1, dtype=jnp.float32)

    # unweighted: default ('mean'-like) and 'sum' reductions
    loss_mean = cdt_loss(x, target, delta_list, gamma=0.5, weight=None, reduction=None)
    loss_sum = cdt_loss(x, target, delta_list, gamma=0.5, weight=None, reduction="sum")

    # weighted + batch not a multiple of the row tile -> exercises the masking path
    N2 = 10
    x2 = jax.random.normal(kx, (N2, C), jnp.float32)
    target2 = jax.random.randint(kt, (N2,), 0, C, jnp.int32)
    w_cls = jax.random.uniform(kw, (C,), jnp.float32, 0.5, 1.5)
    loss_w_mean = cdt_loss(x2, target2, delta_list, gamma=0.5, weight=w_cls, reduction=None)
    loss_w_sum = cdt_loss(x2, target2, delta_list, gamma=0.5, weight=w_cls, reduction="sum")

    jax.block_until_ready((loss_mean, loss_sum, loss_w_mean, loss_w_sum))

    # pure-JAX reference (same math, no Pallas)
    def ref_loss(xr, tr, dl, gamma, weight, reduction):
        d = jnp.power(dl, gamma)
        d = d.shape[0] * d / jnp.sum(d)
        z = xr * d[None, :]
        lse = jax.scipy.special.logsumexp(z, axis=-1)
        per = lse - z[jnp.arange(xr.shape[0]), tr]
        wt = jnp.ones_like(per) if weight is None else weight[tr]
        if reduction == "sum":
            return jnp.sum(per * wt)
        return jnp.sum(per * wt) / jnp.sum(wt)

    assert jnp.allclose(loss_mean, ref_loss(x, target, delta_list, 0.5, None, None),
                        rtol=1e-5, atol=1e-5)
    assert jnp.allclose(loss_sum, ref_loss(x, target, delta_list, 0.5, None, "sum"),
                        rtol=1e-5, atol=1e-5)
    assert jnp.allclose(loss_w_mean, ref_loss(x2, target2, delta_list, 0.5, w_cls, None),
                        rtol=1e-5, atol=1e-5)
    assert jnp.allclose(loss_w_sum, ref_loss(x2, target2, delta_list, 0.5, w_cls, "sum"),
                        rtol=1e-5, atol=1e-5)

    print("KERNEL_OK")
</pallas_src>

<mosaic_0001>
module attributes {stable_mosaic.version = 11 : i64} {
  func.func @kernel(%arg0: i32, %arg1: memref<8x32xf32, #tpu.memory_space<vmem>>, %arg2: memref<1x32xf32, #tpu.memory_space<vmem>>, %arg3: memref<8x1xi32, #tpu.memory_space<vmem>>, %arg4: memref<8x1xf32, #tpu.memory_space<vmem>>) attributes {dimension_semantics = [#tpu.dimension_semantics<parallel>], iteration_bounds = array<i64: 1>, scalar_prefetch = 0 : i64, scratch_operands = 0 : i64, tpu.core_type = #tpu.core_type<tc>, window_params = [{transform_indices = @transform_0, window_bounds = array<i64: 8, 32>}, {pipeline_mode = #tpu.pipeline_mode<synchronous>, transform_indices = @transform_1, window_bounds = array<i64: 1, 32>}, {transform_indices = @transform_2, window_bounds = array<i64: 8, 1>}, {transform_indices = @transform_3, window_bounds = array<i64: 8, 1>}]} {
    %c0 = arith.constant 0 : index
    %c0_0 = arith.constant 0 : index
    %0 = vector.load %arg1[%c0, %c0_0] : memref<8x32xf32, #tpu.memory_space<vmem>>, vector<8x32xf32>
    %c0_1 = arith.constant 0 : index
    %c0_2 = arith.constant 0 : index
    %1 = vector.load %arg2[%c0_1, %c0_2] : memref<1x32xf32, #tpu.memory_space<vmem>>, vector<1x32xf32>
    %2 = vector.broadcast %1 : vector<1x32xf32> to vector<8x32xf32>
    %3 = arith.mulf %0, %2 : vector<8x32xf32>
    %cst = arith.constant dense<0xFF800000> : vector<8xf32>
    %4 = vector.multi_reduction <maximumf>, %3, %cst [1] : vector<8x32xf32> to vector<8xf32>
    %5 = vector.shape_cast %4 : vector<8xf32> to vector<8x1xf32>
    %6 = vector.broadcast %5 : vector<8x1xf32> to vector<8x32xf32>
    %7 = arith.subf %3, %6 : vector<8x32xf32>
    %8 = math.exp %7 : vector<8x32xf32>
    %cst_3 = arith.constant dense<0.000000e+00> : vector<8xf32>
    %9 = vector.multi_reduction <add>, %8, %cst_3 [1] : vector<8x32xf32> to vector<8xf32>
    %10 = vector.shape_cast %9 : vector<8xf32> to vector<8x1xf32>
    %11 = math.log %10 : vector<8x1xf32>
    %12 = arith.addf %5, %11 : vector<8x1xf32>
    %c0_4 = arith.constant 0 : index
    %c0_5 = arith.constant 0 : index
    %13 = vector.load %arg3[%c0_4, %c0_5] : memref<8x1xi32, #tpu.memory_space<vmem>>, vector<8x1xi32>
    %14 = tpu.iota {dimensions = array<i32: 1>} : vector<8x32xi32>
    %15 = vector.broadcast %13 : vector<8x1xi32> to vector<8x32xi32>
    %16 = arith.cmpi eq, %14, %15 : vector<8x32xi32>
    %17 = arith.extui %16 : vector<8x32xi1> to vector<8x32xi32>
    %18 = arith.sitofp %17 : vector<8x32xi32> to vector<8x32xf32>
    %19 = arith.mulf %3, %18 : vector<8x32xf32>
    %cst_6 = arith.constant dense<0.000000e+00> : vector<8xf32>
    %20 = vector.multi_reduction <add>, %19, %cst_6 [1] : vector<8x32xf32> to vector<8xf32>
    %21 = vector.shape_cast %20 : vector<8xf32> to vector<8x1xf32>
    %22 = arith.subf %12, %21 : vector<8x1xf32>
    %c0_7 = arith.constant 0 : index
    %c0_8 = arith.constant 0 : index
    %23 = vector.load %arg4[%c0_7, %c0_8] : memref<8x1xf32, #tpu.memory_space<vmem>>, vector<8x1xf32>
    tpu.vector_store %arg4[%c0_7, %c0_8], %22 {strides = array<i32>} : memref<8x1xf32, #tpu.memory_space<vmem>>, vector<8x1xf32>,
    return
  }
  func.func @transform_0(%arg0: i32) -> (i32, i32) {
    %c0_i32 = arith.constant 0 : i32
    %c0_i32_0 = arith.constant 0 : i32
    return %arg0, %c0_i32 : i32, i32
  }
  func.func @transform_1(%arg0: i32) -> (i32, i32) {
    %c0_i32 = arith.constant 0 : i32
    %c0_i32_0 = arith.constant 0 : i32
    %c0_i32_1 = arith.constant 0 : i32
    return %c0_i32, %c0_i32_0 : i32, i32
  }
  func.func @transform_2(%arg0: i32) -> (i32, i32) {
    %c0_i32 = arith.constant 0 : i32
    %c0_i32_0 = arith.constant 0 : i32
    return %arg0, %c0_i32 : i32, i32
  }
  func.func @transform_3(%arg0: i32) -> (i32, i32) {
    %c0_i32 = arith.constant 0 : i32
    %c0_i32_0 = arith.constant 0 : i32
    return %arg0, %c0_i32 : i32, i32
  }
}

</mosaic_0001>

<llo_original>
// kernel: tpu_custom_call.1
$region0: #{tpu_custom_call.1}
  #allocation0 [shape = 'u32[]', space=smem, size = 0x4, offset = 0x4, fixed_abs, tag = 'smem constant byte address 0x4 - core index']
  #allocation1 [shape = 'u32[72,128]{1,0:T(1,128)}', space=vmem, size = 0x9000, scoped, tag = 'internal scratch']
  %s0 = inlined_call_operand.vmem [shape: f32[8,32], index: 0, kind: input, shape index: {}]
  %s1 = inlined_call_operand.vmem [shape: f32[1,32], index: 1, kind: input, shape index: {}]
  %s2 = inlined_call_operand.vmem [shape: s32[8,1], index: 2, kind: input, shape index: {}]
  %s3 = inlined_call_operand.vmem [shape: f32[8,1], index: 3, kind: output, shape index: {}]
  %s4 = sld [smem:[#allocation0]]
  $region22: #{tpu_custom_call.1} parent=0
    _
  %s6 = ssub.s32 1, %s4
  %s7 = scalar_select 0, %s6, %s4
  // Predicated region
  $region2: #{tpu_custom_call.1} parent=0 // pred_check
    _
  $region3: #{tpu_custom_call.1} parent=0 // pred_check_branch
    %9 = sbr.rel (0) target = $region5
  $region4: #{tpu_custom_call.1} parent=0 // pred_region
    _
  $region5: #{tpu_custom_call.1} parent=0 // pred_fallthru
    _
  // Predicated region
  $region6: #{tpu_custom_call.1} parent=0 // pred_check
    _
  $region7: #{tpu_custom_call.1} parent=0 // pred_check_branch
    %11 = sbr.rel (0) target = $region9
  $region8: #{tpu_custom_call.1} parent=0 // pred_region
    _
  $region9: #{tpu_custom_call.1} parent=0 // pred_fallthru
    _
  // Predicated region
  $region10: #{tpu_custom_call.1} parent=0 // pred_check
    _
  $region11: #{tpu_custom_call.1} parent=0 // pred_check_branch
    %13 = sbr.rel (0) target = $region13
  $region12: #{tpu_custom_call.1} parent=0 // pred_region
    _
  $region13: #{tpu_custom_call.1} parent=0 // pred_fallthru
    _
  %v14 = vld [vmem:[%s0] sm:$0xff]
  %v15 = vld [vmem:[%s1] sm:$0x1]
  %v17 = vperm.slane %v15, 0
  %v19 = vmul.f32 %v14, %v17
  %vm20 = vcmask 261120
  %v21 = vsel %vm20, %v19, -inf
  %22 = vmax.xlane.f32.xlu0 %v21
  %v23 = vpop.xlane.xlu0 %22
  %v24 = vsub.f32 %v19, %v23
  %v25 = vmul.f32 %v24, 1.442695
  %v26 = vpow.pop %v25
  %v27 = vsel %vm20, %v26, 0.0
  %28 = vadd.xlane.f32.xlu0 %v27
  %v29 = vpop.xlane.xlu0 %28
  %v30 = vlog2.pop %v29
  %v31 = vmul.f32 %v30, 0.6931472
  %v32 = vadd.f32 %v23, %v31
  %v33 = vld [vmem:[%s2] sm:$0xff]
  %v34 = vlaneseq
  %v35 = vand.u32 %v34, 127
  %36 = vset.pattern.permute.xlu0 0
  %37 = vperm.xlu0 %36, %v33
  %v38 = vpop.permute.xlu0 %37
  %vm39 = vcmp.eq.s32.totalorder %v35, %v38
  %v40 = vsel %vm39, 1, 0
  %v41 = vcvt.s32.f32 %v40
  %v42 = vmul.f32 %v19, %v41
  %v43 = vsel %vm20, %v42, 0.0
  %44 = vadd.xlane.f32.xlu0 %v43
  %v45 = vpop.xlane.xlu0 %44
  %v46 = vsub.f32 %v32, %v45
  %vm47 = vcmask 7168
  %48 = vst.msk [vmem:[%s3] sm:$0xff] %vm47, %v46
  // Predicated region
  $region14: #{tpu_custom_call.1} parent=0 // pred_check
    _
  $region15: #{tpu_custom_call.1} parent=0 // pred_check_branch
    %50 = sbr.rel (0) target = $region17
  $region16: #{tpu_custom_call.1} parent=0 // pred_region
    _
  $region17: #{tpu_custom_call.1} parent=0 // pred_fallthru
    _
  // Predicated region
  $region18: #{tpu_custom_call.1} parent=0 // pred_check
    _
  $region19: #{tpu_custom_call.1} parent=0 // pred_check_branch
    %52 = sbr.rel (0) target = $region21
  $region20: #{tpu_custom_call.1} parent=0 // pred_region
    _
  $region21: #{tpu_custom_call.1} parent=0 // pred_fallthru
    _

</llo_original>
